<compile_context>
chip_gen: v6e
topology: v6e:2x2x1
jax: 0.10.0
libtpu: 0.0.40
codegen_flags: <defaults>
</compile_context>

<pallas_src>
import functools
import math

import jax
import jax.numpy as jnp
from jax import lax
from jax.experimental import pallas as pl
from jax.experimental.pallas import tpu as pltpu


_INV_SQRT2 = 1.0 / math.sqrt(2.0)


def _gelu(x, approximate=False):
    if approximate:
        # tanh-approx routes through the EUP (separate issue slot).
        return jax.nn.gelu(x, approximate=True)
    # PyTorch nn.GELU() default = exact erf formulation.
    return 0.5 * x * (1.0 + lax.erf(x * _INV_SQRT2))


def _round_up(x, m):
    return (x + m - 1) // m * m


def _pad2d(a, rows, cols):
    pr, pc = rows - a.shape[0], cols - a.shape[1]
    if pr == 0 and pc == 0:
        return a
    return jnp.pad(a, ((0, pr), (0, pc)))


def _default_row_tile(weight_resident):
    if weight_resident:
        return 256
    try:
        kind = jax.devices()[0].device_kind.lower()
    except Exception:  # pragma: no cover - defensive
        kind = ""
    # v5e's lower MXU rate is already roofline-balanced around tm=256.
    return 256 if "v5" in kind else 512


# ----------------------------------------------------------------------------
# Kernels
# ----------------------------------------------------------------------------
def _mlp_resident_kernel(x_ref, w1_ref, b1_ref, w2_ref, b2_ref, o_ref,
                         acc_ref, *, tkh, n_chunks, approximate):
    """Weights fully resident in VMEM; H reduced with an in-kernel loop."""
    acc_ref[...] = jnp.zeros_like(acc_ref)

    def step(j, carry):
        off = pl.multiple_of(j * tkh, 128)
        h = jnp.dot(x_ref[...], w1_ref[:, pl.ds(off, tkh)],
                    preferred_element_type=jnp.float32)
        h = _gelu(h + b1_ref[:, pl.ds(off, tkh)], approximate)
        # Cast back to the weight dtype -> MXU bf16 fast path when bf16.
        acc_ref[...] += jnp.dot(h.astype(w2_ref.dtype),
                                w2_ref[pl.ds(off, tkh), :],
                                preferred_element_type=jnp.float32)
        return carry

    lax.fori_loop(0, n_chunks, step, 0, unroll=(n_chunks <= 8))
    o_ref[...] = (acc_ref[...] + b2_ref[...]).astype(o_ref.dtype)


def _mlp_stream_kernel(x_ref, w1_ref, b1_ref, w2_ref, b2_ref, o_ref,
                       acc_ref, *, approximate):
    """Fallback: H chunks streamed via the grid (reduction axis last)."""
    k = pl.program_id(1)

    @pl.when(k == 0)
    def _():
        acc_ref[...] = jnp.zeros_like(acc_ref)

    h = jnp.dot(x_ref[...], w1_ref[...], preferred_element_type=jnp.float32)
    h = _gelu(h + b1_ref[...], approximate)
    acc_ref[...] += jnp.dot(h.astype(w2_ref.dtype), w2_ref[...],
                            preferred_element_type=jnp.float32)

    @pl.when(k == pl.num_programs(1) - 1)
    def _():
        o_ref[...] = (acc_ref[...] + b2_ref[...]).astype(o_ref.dtype)


# ----------------------------------------------------------------------------
# Wrapper
# ----------------------------------------------------------------------------
def mlp_pallas(x, w1, b1, w2, b2, *, tm=None, tkh=512, weight_resident=None,
               approximate_gelu=False, vmem_limit_bytes=None):
    """x: [B, N, C_in]; w1: [C_in, H]; b1: [H]; w2: [H, C_out]; b2: [C_out].

    Weights are stored pre-transposed (in, out) so the kernel computes x @ W.
    Dropout p=0.0 is the identity and is omitted.
    """
    B, N, C_in = x.shape
    H = w1.shape[1]
    C_out = w2.shape[1]
    M = B * N
    out_dtype = x.dtype

    x_item = jnp.dtype(x.dtype).itemsize
    w_item = jnp.dtype(w1.dtype).itemsize
    o_item = jnp.dtype(out_dtype).itemsize

    # Lane-dense padding: channel dims -> multiples of 128 (exact through GELU
    # since zero weight rows/cols + zero bias contribute exactly 0).
    C_in_p = _round_up(C_in, 128)
    C_out_p = _round_up(C_out, 128)
    tkh = _round_up(min(tkh, _round_up(H, 128)), 128)
    H_p = _round_up(H, tkh)

    # Keep both fc weights (double-buffered) well under v7x's 64 MiB/TC.
    w_raw_bytes = (C_in_p * H_p + H_p * C_out_p) * w_item
    if weight_resident is None:
        weight_resident = w_raw_bytes <= (16 << 20)

    # Row tile: multiple of the dtype's packed sublane count (8 f32, 16 bf16).
    sub = 8 * max(1, 4 // x_item)
    if tm is None:
        tm = _default_row_tile(weight_resident)
    tm = _round_up(min(tm, _round_up(M, sub)), sub)
    M_p = _round_up(M, tm)

    # NOTE: in a real model the padded/laid-out weights should be prepared
    # once outside the hot path; pads are skipped when already aligned.
    x2 = _pad2d(x.reshape(M, C_in), M_p, C_in_p)
    w1p = _pad2d(w1, C_in_p, H_p)
    b1p = _pad2d(b1.reshape(1, H), 1, H_p)
    w2p = _pad2d(w2, H_p, C_out_p)
    b2p = _pad2d(b2.reshape(1, C_out), 1, C_out_p)

    n_row_tiles = M_p // tm

    if weight_resident:
        n_chunks = H_p // tkh
        kernel = functools.partial(_mlp_resident_kernel, tkh=tkh,
                                   n_chunks=n_chunks,
                                   approximate=approximate_gelu)
        grid = (n_row_tiles,)
        in_specs = [
            pl.BlockSpec((tm, C_in_p), lambda i: (i, 0)),       # x tile
            pl.BlockSpec((C_in_p, H_p), lambda i: (0, 0)),      # fc1 W (resident)
            pl.BlockSpec((1, H_p), lambda i: (0, 0)),           # fc1 bias
            pl.BlockSpec((H_p, C_out_p), lambda i: (0, 0)),     # fc2 W (resident)
            pl.BlockSpec((1, C_out_p), lambda i: (0, 0)),       # fc2 bias
        ]
        out_spec = pl.BlockSpec((tm, C_out_p), lambda i: (i, 0))
        dim_sem = ("parallel",)
        weight_hbm_bytes = (w1p.size + b1p.size + w2p.size + b2p.size) * w_item
        resident_vmem = 2 * (w1p.size + b1p.size + w2p.size + b2p.size) * w_item
    else:
        kernel = functools.partial(_mlp_stream_kernel,
                                   approximate=approximate_gelu)
        grid = (n_row_tiles, H_p // tkh)
        in_specs = [
            pl.BlockSpec((tm, C_in_p), lambda i, k: (i, 0)),    # x tile
            pl.BlockSpec((C_in_p, tkh), lambda i, k: (0, k)),   # fc1 W chunk
            pl.BlockSpec((1, tkh), lambda i, k: (0, k)),        # fc1 bias chunk
            pl.BlockSpec((tkh, C_out_p), lambda i, k: (k, 0)),  # fc2 W chunk
            pl.BlockSpec((1, C_out_p), lambda i, k: (0, 0)),    # fc2 bias
        ]
        out_spec = pl.BlockSpec((tm, C_out_p), lambda i, k: (i, 0))
        dim_sem = ("parallel", "arbitrary")
        # Weight chunks are re-streamed for every row tile in this fallback.
        weight_hbm_bytes = (n_row_tiles * (w1p.size + b1p.size + w2p.size)
                            + b2p.size) * w_item
        resident_vmem = 2 * ((C_in_p + C_out_p + 1) * tkh + C_out_p) * w_item

    if vmem_limit_bytes is None:
        acc_bytes = tm * C_out_p * 4
        io_bytes = 2 * tm * C_in_p * x_item + 2 * tm * C_out_p * o_item
        vmem_limit_bytes = int((acc_bytes + io_bytes + resident_vmem) * 1.3)
        vmem_limit_bytes += 8 << 20
        vmem_limit_bytes = max(32 << 20, min(vmem_limit_bytes, 100 << 20))

    cost = pl.CostEstimate(
        flops=2 * M_p * C_in_p * H_p + 2 * M_p * H_p * C_out_p,
        transcendentals=M_p * H_p,                 # one erf/tanh per activation
        bytes_accessed=int(x2.size * x_item + M_p * C_out_p * o_item
                           + weight_hbm_bytes),
    )

    out = pl.pallas_call(
        kernel,
        out_shape=jax.ShapeDtypeStruct((M_p, C_out_p), out_dtype),
        grid_spec=pltpu.PrefetchScalarGridSpec(
            num_scalar_prefetch=0,
            grid=grid,
            in_specs=in_specs,
            out_specs=out_spec,
            scratch_shapes=[pltpu.VMEM((tm, C_out_p), jnp.float32)],
        ),
        compiler_params=pltpu.CompilerParams(
            dimension_semantics=dim_sem,
            vmem_limit_bytes=int(vmem_limit_bytes),
        ),
        cost_estimate=cost,
    )(x2, w1p, b1p, w2p, b2p)

    if M_p != M or C_out_p != C_out:
        out = out[:M, :C_out]
    return out.reshape(B, N, C_out)


# ----------------------------------------------------------------------------
# Reference + test harness
# ----------------------------------------------------------------------------
def mlp_reference(x, w1, b1, w2, b2):
    x, w1, b1, w2, b2 = [jnp.asarray(a, jnp.float32)
                         for a in (x, w1, b1, w2, b2)]
    h = _gelu(jnp.dot(x, w1) + b1)
    return jnp.dot(h, w2) + b2


def _init_params(key, c_in, h, c_out, dtype=jnp.float32):
    # Deterministic nn.Linear-style init: U(-1/sqrt(fan_in), 1/sqrt(fan_in)).
    kw1, kb1, kw2, kb2 = jax.random.split(key, 4)
    lim1 = 1.0 / math.sqrt(c_in)
    w1 = jax.random.uniform(kw1, (c_in, h), dtype, -lim1, lim1)
    b1 = jax.random.uniform(kb1, (h,), dtype, -lim1, lim1)
    lim2 = 1.0 / math.sqrt(h)
    w2 = jax.random.uniform(kw2, (h, c_out), dtype, -lim2, lim2)
    b2 = jax.random.uniform(kb2, (c_out,), dtype, -lim2, lim2)
    return w1, b1, w2, b2


if __name__ == "__main__":
    key = jax.random.PRNGKey(0)

    # Test 1: tiny module-consistent shapes (tokens channels-last), fp32,
    # weight-resident single-chunk path.
    k1, k2, key = jax.random.split(key, 3)
    B, N, C_in, H, C_out = 2, 8, 16, 32, 16
    x = jax.random.normal(k1, (B, N, C_in), dtype=jnp.float32)
    w1, b1, w2, b2 = _init_params(k2, C_in, H, C_out)
    y = jax.block_until_ready(mlp_pallas(x, w1, b1, w2, b2))
    y_ref = mlp_reference(x, w1, b1, w2, b2)
    assert y.shape == (B, N, C_out)
    assert jnp.allclose(y, y_ref, atol=1e-5, rtol=1e-5), "mismatch (test 1)"

    # Test 2: lane-dense shapes, forcing the chunked H-streaming fallback to
    # exercise multi-row-tile + multi-k accumulation.
    k3, k4, key = jax.random.split(key, 3)
    B, N, C_in, H, C_out = 2, 64, 128, 256, 128
    x = jax.random.normal(k3, (B, N, C_in), dtype=jnp.float32)
    w1, b1, w2, b2 = _init_params(k4, C_in, H, C_out)
    y = jax.block_until_ready(
        mlp_pallas(x, w1, b1, w2, b2, tm=64, tkh=128, weight_resident=False))
    y_ref = mlp_reference(x, w1, b1, w2, b2)
    assert jnp.allclose(y, y_ref, atol=1e-4, rtol=1e-4), "mismatch (test 2)"

    # Test 3: bf16 storage (fp32 accumulation), resident path with an
    # in-kernel multi-chunk H reduction.
    k5, k6, key = jax.random.split(key, 3)
    B, N, C_in, H, C_out = 2, 32, 128, 256, 128
    x = jax.random.normal(k5, (B, N, C_in), dtype=jnp.float32)
    w1, b1, w2, b2 = _init_params(k6, C_in, H, C_out)
    y = jax.block_until_ready(
        mlp_pallas(x.astype(jnp.bfloat16), w1.astype(jnp.bfloat16),
                   b1.astype(jnp.bfloat16), w2.astype(jnp.bfloat16),
                   b2.astype(jnp.bfloat16), tkh=128))
    y_ref = mlp_reference(x, w1, b1, w2, b2)
    assert jnp.allclose(y.astype(jnp.float32), y_ref, atol=5e-2, rtol=5e-2), \
        "mismatch (test 3)"

    # TODO(synk): stochastic dropout (p>0) is not implemented (module default p=0.0).
    print("KERNEL_OK")
</pallas_src>

<mosaic_0001>
module attributes {stable_mosaic.version = 11 : i64} {
  func.func @_mlp_resident_kernel(%arg0: i32, %arg1: memref<16x128xf32, #tpu.memory_space<vmem>>, %arg2: memref<128x128xf32, #tpu.memory_space<vmem>>, %arg3: memref<1x128xf32, #tpu.memory_space<vmem>>, %arg4: memref<128x128xf32, #tpu.memory_space<vmem>>, %arg5: memref<1x128xf32, #tpu.memory_space<vmem>>, %arg6: memref<16x128xf32, #tpu.memory_space<vmem>>, %arg7: memref<16x128xf32, #tpu.memory_space<vmem>>) attributes {dimension_semantics = [#tpu.dimension_semantics<parallel>], iteration_bounds = array<i64: 1>, scalar_prefetch = 0 : i64, scratch_operands = 1 : i64, tpu.core_type = #tpu.core_type<tc>, window_params = [{transform_indices = @transform_0, window_bounds = array<i64: 16, 128>}, {pipeline_mode = #tpu.pipeline_mode<synchronous>, transform_indices = @transform_1, window_bounds = array<i64: 128, 128>}, {pipeline_mode = #tpu.pipeline_mode<synchronous>, transform_indices = @transform_2, window_bounds = array<i64: 1, 128>}, {pipeline_mode = #tpu.pipeline_mode<synchronous>, transform_indices = @transform_3, window_bounds = array<i64: 128, 128>}, {pipeline_mode = #tpu.pipeline_mode<synchronous>, transform_indices = @transform_4, window_bounds = array<i64: 1, 128>}, {transform_indices = @transform_5, window_bounds = array<i64: 16, 128>}]} {
    %cst = arith.constant 0.000000e+00 : f32
    %0 = vector.broadcast %cst : f32 to vector<16x128xf32>
    %c0 = arith.constant 0 : index
    %c0_0 = arith.constant 0 : index
    %1 = vector.load %arg7[%c0, %c0_0] : memref<16x128xf32, #tpu.memory_space<vmem>>, vector<16x128xf32>
    tpu.vector_store %arg7[%c0, %c0_0], %0 {strides = array<i32>} : memref<16x128xf32, #tpu.memory_space<vmem>>, vector<16x128xf32>,
    %c0_i32 = arith.constant 0 : i32
    %c128_i32 = arith.constant 128 : i32
    %2 = arith.muli %c0_i32, %c128_i32 : i32
    %3 = tpu.assume_multiple %2, 128 : i32
    %c0_1 = arith.constant 0 : index
    %c0_2 = arith.constant 0 : index
    %4 = vector.load %arg1[%c0_1, %c0_2] : memref<16x128xf32, #tpu.memory_space<vmem>>, vector<16x128xf32>
    %c0_3 = arith.constant 0 : index
    %5 = arith.index_cast %3 : i32 to index
    %6 = vector.load %arg2[%c0_3, %5] : memref<128x128xf32, #tpu.memory_space<vmem>>, vector<128x128xf32>
    %cst_4 = arith.constant dense<0.000000e+00> : vector<16x128xf32>
    %7 = tpu.matmul %4, %6, %cst_4 {dimension_numbers = #tpu.dot_dimension_numbers<[1], [0], [0], [1], [0, 0, 1, 1], [], []>} : vector<16x128xf32>, vector<128x128xf32>, vector<16x128xf32> -> vector<16x128xf32>
    %c0_5 = arith.constant 0 : index
    %8 = arith.index_cast %3 : i32 to index
    %9 = vector.load %arg3[%c0_5, %8] : memref<1x128xf32, #tpu.memory_space<vmem>>, vector<1x128xf32>
    %10 = vector.broadcast %9 : vector<1x128xf32> to vector<16x128xf32>
    %11 = arith.addf %7, %10 : vector<16x128xf32>
    %cst_6 = arith.constant 5.000000e-01 : f32
    %12 = vector.broadcast %cst_6 : f32 to vector<16x128xf32>
    %13 = arith.mulf %12, %11 : vector<16x128xf32>
    %cst_7 = arith.constant 0.707106769 : f32
    %14 = vector.broadcast %cst_7 : f32 to vector<16x128xf32>
    %15 = arith.mulf %11, %14 : vector<16x128xf32>
    %16 = math.erf %15 : vector<16x128xf32>
    %cst_8 = arith.constant 1.000000e+00 : f32
    %17 = vector.broadcast %cst_8 : f32 to vector<16x128xf32>
    %18 = arith.addf %17, %16 : vector<16x128xf32>
    %19 = arith.mulf %13, %18 : vector<16x128xf32>
    %c0_9 = arith.constant 0 : index
    %c0_10 = arith.constant 0 : index
    %20 = vector.load %arg7[%c0_9, %c0_10] : memref<16x128xf32, #tpu.memory_space<vmem>>, vector<16x128xf32>
    %21 = arith.index_cast %3 : i32 to index
    %c0_11 = arith.constant 0 : index
    %22 = vector.load %arg4[%21, %c0_11] : memref<128x128xf32, #tpu.memory_space<vmem>>, vector<128x128xf32>
    %cst_12 = arith.constant dense<0.000000e+00> : vector<16x128xf32>
    %23 = tpu.matmul %19, %22, %cst_12 {dimension_numbers = #tpu.dot_dimension_numbers<[1], [0], [0], [1], [0, 0, 1, 1], [], []>} : vector<16x128xf32>, vector<128x128xf32>, vector<16x128xf32> -> vector<16x128xf32>
    %24 = arith.addf %20, %23 : vector<16x128xf32>
    %c0_13 = arith.constant 0 : index
    %c0_14 = arith.constant 0 : index
    %25 = vector.load %arg7[%c0_13, %c0_14] : memref<16x128xf32, #tpu.memory_space<vmem>>, vector<16x128xf32>
    tpu.vector_store %arg7[%c0_13, %c0_14], %24 {strides = array<i32>} : memref<16x128xf32, #tpu.memory_space<vmem>>, vector<16x128xf32>,
    %c1_i32 = arith.constant 1 : i32
    %c0_15 = arith.constant 0 : index
    %c0_16 = arith.constant 0 : index
    %26 = vector.load %arg7[%c0_15, %c0_16] : memref<16x128xf32, #tpu.memory_space<vmem>>, vector<16x128xf32>
    %c0_17 = arith.constant 0 : index
    %c0_18 = arith.constant 0 : index
    %27 = vector.load %arg5[%c0_17, %c0_18] : memref<1x128xf32, #tpu.memory_space<vmem>>, vector<1x128xf32>
    %28 = vector.broadcast %27 : vector<1x128xf32> to vector<16x128xf32>
    %29 = arith.addf %26, %28 : vector<16x128xf32>
    %c0_19 = arith.constant 0 : index
    %c0_20 = arith.constant 0 : index
    %30 = vector.load %arg6[%c0_19, %c0_20] : memref<16x128xf32, #tpu.memory_space<vmem>>, vector<16x128xf32>
    tpu.vector_store %arg6[%c0_19, %c0_20], %29 {strides = array<i32>} : memref<16x128xf32, #tpu.memory_space<vmem>>, vector<16x128xf32>,
    return
  }
  func.func @transform_0(%arg0: i32) -> (i32, i32) {
    %c0_i32 = arith.constant 0 : i32
    %c0_i32_0 = arith.constant 0 : i32
    return %arg0, %c0_i32 : i32, i32
  }
  func.func @transform_1(%arg0: i32) -> (i32, i32) {
    %c0_i32 = arith.constant 0 : i32
    %c0_i32_0 = arith.constant 0 : i32
    %c0_i32_1 = arith.constant 0 : i32
    return %c0_i32, %c0_i32_0 : i32, i32
  }
  func.func @transform_2(%arg0: i32) -> (i32, i32) {
    %c0_i32 = arith.constant 0 : i32
    %c0_i32_0 = arith.constant 0 : i32
    %c0_i32_1 = arith.constant 0 : i32
    return %c0_i32, %c0_i32_0 : i32, i32
  }
  func.func @transform_3(%arg0: i32) -> (i32, i32) {
    %c0_i32 = arith.constant 0 : i32
    %c0_i32_0 = arith.constant 0 : i32
    %c0_i32_1 = arith.constant 0 : i32
    return %c0_i32, %c0_i32_0 : i32, i32
  }
  func.func @transform_4(%arg0: i32) -> (i32, i32) {
    %c0_i32 = arith.constant 0 : i32
    %c0_i32_0 = arith.constant 0 : i32
    %c0_i32_1 = arith.constant 0 : i32
    return %c0_i32, %c0_i32_0 : i32, i32
  }
  func.func @transform_5(%arg0: i32) -> (i32, i32) {
    %c0_i32 = arith.constant 0 : i32
    %c0_i32_0 = arith.constant 0 : i32
    return %arg0, %c0_i32 : i32, i32
  }
}

</mosaic_0001>

<llo_original>
// kernel: tpu_custom_call.1
$region0: #{tpu_custom_call.1}
  #allocation0 [shape = 'u32[]', space=smem, size = 0x4, offset = 0x4, fixed_abs, tag = 'smem constant byte address 0x4 - core index']
  #allocation1 [shape = 'u32[144,128]{1,0:T(1,128)}', space=vmem, size = 0x12000, scoped, tag = 'internal scratch']
  #allocation2 [shape = 'f32[16,128]{1,0:T(8,128)}', space=vmem, size = 0x2000, scoped, tag = 'scratch operand']
  %s0 = inlined_call_operand.hbm [shape: f32[16,128], index: 0, kind: input, shape index: {}]
  %s1 = inlined_call_operand.hbm [shape: f32[128,128], index: 1, kind: input, shape index: {}]
  %s2 = inlined_call_operand.vmem [shape: f32[1,128], index: 2, kind: input, shape index: {}]
  %s3 = inlined_call_operand.hbm [shape: f32[128,128], index: 3, kind: input, shape index: {}]
  %s4 = inlined_call_operand.vmem [shape: f32[1,128], index: 4, kind: input, shape index: {}]
  %s5 = inlined_call_operand.hbm [shape: f32[16,128], index: 5, kind: output, shape index: {}]
  %s6 = sld [smem:[#allocation0]]
  $region42: #{tpu_custom_call.1} parent=0
    _
  %s8 = ssub.s32 1, %s6
  %s9 = scalar_select 0, %s8, %s6
  $region1: #{tpu_custom_call.1} parent=0
    #allocation3 [shape = 'u8[8192]{0}', space=vmem, size = 0x2000, scoped, tag = 'input window, operand 0, single buffered']
    #allocation4 [shape = 's32[1]{0}', space=sflag, size = 0x4, scoped, tag = 'scoped memory for tpu_custom_call.1']
    #allocation5 [shape = 's32[1]{0}', space=sflag, size = 0x4, scoped, tag = 'scoped memory for tpu_custom_call.1']
    #allocation6 [shape = 'u8[65536]{0}', space=vmem, size = 0x10000, scoped, tag = 'input window, operand 1, single buffered']
    #allocation7 [shape = 's32[1]{0}', space=sflag, size = 0x4, scoped, tag = 'scoped memory for tpu_custom_call.1']
    #allocation8 [shape = 'u8[65536]{0}', space=vmem, size = 0x10000, scoped, tag = 'input window, operand 3, single buffered']
    #allocation9 [shape = 'u8[8192]{0}', space=vmem, size = 0x2000, scoped, tag = 'output window, operand 0, single buffered']
    %10 = vsyncpa [#allocation4], 0
    %11 = vsyncpa [#allocation7], 0
    %12 = vsyncpa [#allocation5], 0
    // Predicated region
    $region2: #{tpu_custom_call.1} parent=1 // pred_check
      _
    $region3: #{tpu_custom_call.1} parent=1 // pred_check_branch
      %14 = sbr.rel (0) target = $region5
    $region4: #{tpu_custom_call.1} parent=1 // pred_region
      %s16 = ssub.s32 256, 256
      %17 = vsyncadd [#allocation4], %s16
      %s18 = sshll.u32 [#allocation3], 4
      %s19 = int_to_ptr.vmem [resolvable:$true] %s18
      %24 = dma.hbm_to_vmem [thread:$0]  %s0, 256, %s19, [#allocation4], 128, 128, 8
    $region5: #{tpu_custom_call.1} parent=1 // pred_fallthru
      _
    // Predicated region
    $region6: #{tpu_custom_call.1} parent=1 // pred_check
      _
    $region7: #{tpu_custom_call.1} parent=1 // pred_check_branch
      %26 = sbr.rel (0) target = $region9
    $region8: #{tpu_custom_call.1} parent=1 // pred_region
      %s28 = ssub.s32 2048, 2048
      %29 = vsyncadd [#allocation7], %s28
      %s30 = sshll.u32 [#allocation6], 4
      %s31 = int_to_ptr.vmem [resolvable:$true] %s30
      %36 = dma.hbm_to_vmem [thread:$0]  %s1, 2048, %s31, [#allocation7], 128, 128, 8
    $region9: #{tpu_custom_call.1} parent=1 // pred_fallthru
      _
    // Predicated region
    $region10: #{tpu_custom_call.1} parent=1 // pred_check
      _
    $region11: #{tpu_custom_call.1} parent=1 // pred_check_branch
      %38 = sbr.rel (0) target = $region13
    $region12: #{tpu_custom_call.1} parent=1 // pred_region
      _
    $region13: #{tpu_custom_call.1} parent=1 // pred_fallthru
      _
    // Predicated region
    $region14: #{tpu_custom_call.1} parent=1 // pred_check
      _
    $region15: #{tpu_custom_call.1} parent=1 // pred_check_branch
      %40 = sbr.rel (0) target = $region17
    $region16: #{tpu_custom_call.1} parent=1 // pred_region
      %s42 = ssub.s32 2048, 2048
      %43 = vsyncadd [#allocation7], %s42
      %s44 = sshll.u32 [#allocation8], 4
      %s45 = int_to_ptr.vmem [resolvable:$true] %s44
      %50 = dma.hbm_to_vmem [thread:$0]  %s3, 2048, %s45, [#allocation7], 128, 128, 8
    $region17: #{tpu_custom_call.1} parent=1 // pred_fallthru
      _
    // Predicated region
    $region18: #{tpu_custom_call.1} parent=1 // pred_check
      _
    $region19: #{tpu_custom_call.1} parent=1 // pred_check_branch
      %52 = sbr.rel (0) target = $region21
    $region20: #{tpu_custom_call.1} parent=1 // pred_region
      _
    $region21: #{tpu_custom_call.1} parent=1 // pred_fallthru
      _
    // Predicated region
    $region22: #{tpu_custom_call.1} parent=1 // pred_check
      _
    $region23: #{tpu_custom_call.1} parent=1 // pred_check_branch
      %54 = sbr.rel (0) target = $region25
    $region24: #{tpu_custom_call.1} parent=1 // pred_region
      %55 = dma.done [#allocation4], 256
    $region25: #{tpu_custom_call.1} parent=1 // pred_fallthru
      _
    // Predicated region
    $region26: #{tpu_custom_call.1} parent=1 // pred_check
      _
    $region27: #{tpu_custom_call.1} parent=1 // pred_check_branch
      %57 = sbr.rel (0) target = $region29
    $region28: #{tpu_custom_call.1} parent=1 // pred_region
      %58 = dma.done [#allocation7], 2048
    $region29: #{tpu_custom_call.1} parent=1 // pred_fallthru
      _
    // Predicated region
    $region30: #{tpu_custom_call.1} parent=1 // pred_check
      _
    $region31: #{tpu_custom_call.1} parent=1 // pred_check_branch
      %60 = sbr.rel (0) target = $region33
    $region32: #{tpu_custom_call.1} parent=1 // pred_region
      %61 = dma.done [#allocation7], 2048
    $region33: #{tpu_custom_call.1} parent=1 // pred_fallthru
      _
    %62 = vst [vmem:[#allocation2] sm:$0xff] 0.0
    %63 = vst [vmem:[#allocation2 + $0x8] sm:$0xff] 0.0
    %v64 = vld [vmem:[#allocation3] sm:$0xff]
    %v65 = vld [vmem:[#allocation3 + $0x8] sm:$0xff]
    %v66 = vld [vmem:[#allocation6] sm:$0xff]
    %v67 = vld [vmem:[#allocation6 + $0x8] sm:$0xff]
    %v68 = vld [vmem:[#allocation6 + $0x10] sm:$0xff]
    %v69 = vld [vmem:[#allocation6 + $0x18] sm:$0xff]
    %v70 = vld [vmem:[#allocation6 + $0x20] sm:$0xff]
    %v71 = vld [vmem:[#allocation6 + $0x28] sm:$0xff]
    %v72 = vld [vmem:[#allocation6 + $0x30] sm:$0xff]
    %v73 = vld [vmem:[#allocation6 + $0x38] sm:$0xff]
    %v74 = vld [vmem:[#allocation6 + $0x40] sm:$0xff]
    %v75 = vld [vmem:[#allocation6 + $0x48] sm:$0xff]
    %v76 = vld [vmem:[#allocation6 + $0x50] sm:$0xff]
    %v77 = vld [vmem:[#allocation6 + $0x58] sm:$0xff]
    %v78 = vld [vmem:[#allocation6 + $0x60] sm:$0xff]
    %v79 = vld [vmem:[#allocation6 + $0x68] sm:$0xff]
    %v80 = vld [vmem:[#allocation6 + $0x70] sm:$0xff]
    %v81 = vld [vmem:[#allocation6 + $0x78] sm:$0xff]
    %v82 = vld [vmem:[%s2] sm:$0x1]
    %v84 = vlaneseq
    %v85 = vshrl.u32 %v84, 7
    %v86 = vsub.s32 0, %v85
    %v87 = vrot.slane %v82, %v86
    %89 = vmatprep.subr.mxu0 0.0
    %90 = vmatpush1.msra.mxu0 %v81
    %91 = vmatprep.subr.mxu0 0.0
    %92 = vmatpush1.msra.mxu0 %v80
    %93 = vmatprep.subr.mxu0 0.0
    %94 = vmatpush1.msra.mxu0 %v79
    %95 = vmatprep.subr.mxu0 0.0
    %96 = vmatpush1.msra.mxu0 %v78
    %97 = vmatprep.subr.mxu0 0.0
    %98 = vmatpush1.msra.mxu0 %v77
    %99 = vmatprep.subr.mxu0 0.0
    %100 = vmatpush1.msra.mxu0 %v76
    %101 = vmatprep.subr.mxu0 0.0
    %102 = vmatpush1.msra.mxu0 %v75
    %103 = vmatprep.subr.mxu0 0.0
    %104 = vmatpush1.msra.mxu0 %v74
    %105 = vmatprep.subr.mxu0 0.0
    %106 = vmatpush1.msra.mxu0 %v73
    %107 = vmatprep.subr.mxu0 0.0
    %108 = vmatpush1.msra.mxu0 %v72
    %109 = vmatprep.subr.mxu0 0.0
    %110 = vmatpush1.msra.mxu0 %v71
    %111 = vmatprep.subr.mxu0 0.0
    %112 = vmatpush1.msra.mxu0 %v70
    %113 = vmatprep.subr.mxu0 0.0
    %114 = vmatpush1.msra.mxu0 %v69
    %115 = vmatprep.subr.mxu0 0.0
    %116 = vmatpush1.msra.mxu0 %v68
    %117 = vmatprep.subr.mxu0 0.0
    %118 = vmatpush1.msra.mxu0 %v67
    %119 = vmatprep.subr.mxu0 0.0
    %120 = vmatpush1.msra.mxu0 %v66
    %121 = vmatprep.subr.mxu0 0.0
    %122 = vmatpush2.msra.mxu0 0.0
    %123 = vmatprep.subr.mxu0 0.0
    %124 = vmatpush2.msra.mxu0 0.0
    %125 = vmatprep.subr.mxu0 0.0
    %126 = vmatpush2.msra.mxu0 0.0
    %127 = vmatprep.subr.mxu0 0.0
    %128 = vmatpush2.msra.mxu0 0.0
    %129 = vmatprep.subr.mxu0 0.0
    %130 = vmatpush2.msra.mxu0 0.0
    %131 = vmatprep.subr.mxu0 0.0
    %132 = vmatpush2.msra.mxu0 0.0
    %133 = vmatprep.subr.mxu0 0.0
    %134 = vmatpush2.msra.mxu0 0.0
    %135 = vmatprep.subr.mxu0 0.0
    %136 = vmatpush2.msra.mxu0 0.0
    %137 = vmatprep.subr.mxu0 0.0
    %138 = vmatpush2.msra.mxu0 0.0
    %139 = vmatprep.subr.mxu0 0.0
    %140 = vmatpush2.msra.mxu0 0.0
    %141 = vmatprep.subr.mxu0 0.0
    %142 = vmatpush2.msra.mxu0 0.0
    %143 = vmatprep.subr.mxu0 0.0
    %144 = vmatpush2.msra.mxu0 0.0
    %145 = vmatprep.subr.mxu0 0.0
    %146 = vmatpush2.msra.mxu0 0.0
    %147 = vmatprep.subr.mxu0 0.0
    %148 = vmatpush2.msra.mxu0 0.0
    %149 = vmatprep.subr.mxu0 0.0
    %150 = vmatpush2.msra.mxu0 0.0
    %151 = vmatprep.subr.mxu0 0.0
    %152 = vmatpush2.msra.mxu0 0.0
    %153 = vmatprep.mubr.f32.mxu0 0.0
    %154 = vmatmul.mubr.f32.gmra.mxu0 %v64
    %v155 = vpop.f32.mrf.mxu0
    %v156 = vadd.f32 %v87, %v155
    %v157 = vpop.f32.mrf.mxu0
    %158 = vmatprep.mubr.f32.mxu0 0.0
    %159 = vmatmul.mubr.f32.gmra.mxu0 %v65
    %v160 = vpop.f32.mrf.mxu0
    %v161 = vadd.f32 %v87, %v160
    %v162 = vpop.f32.mrf.mxu0
    %163 = vdwg.mxu0
    %v164 = vmul.f32 %v156, 0.5
    %v165 = vmul.f32 %v161, 0.5
    %v166 = vmul.f32 %v156, 0.70710677
    %v167 = vmul.f32 %v161, 0.70710677
    %v168 = verf.f32.pop %v166
    %v169 = verf.f32.pop %v167
    %v170 = vadd.f32 %v168, 1.0
    %v171 = vadd.f32 %v169, 1.0
    %v172 = vmul.f32 %v164, %v170
    %v173 = vmul.f32 %v165, %v171
    %v174 = vld [vmem:[#allocation2] sm:$0xff]
    %v175 = vld [vmem:[#allocation2 + $0x8] sm:$0xff]
    %v176 = vld [vmem:[#allocation8] sm:$0xff]
    %v177 = vld [vmem:[#allocation8 + $0x8] sm:$0xff]
    %v178 = vld [vmem:[#allocation8 + $0x10] sm:$0xff]
    %v179 = vld [vmem:[#allocation8 + $0x18] sm:$0xff]
    %v180 = vld [vmem:[#allocation8 + $0x20] sm:$0xff]
    %v181 = vld [vmem:[#allocation8 + $0x28] sm:$0xff]
    %v182 = vld [vmem:[#allocation8 + $0x30] sm:$0xff]
    %v183 = vld [vmem:[#allocation8 + $0x38] sm:$0xff]
    %v184 = vld [vmem:[#allocation8 + $0x40] sm:$0xff]
    %v185 = vld [vmem:[#allocation8 + $0x48] sm:$0xff]
    %v186 = vld [vmem:[#allocation8 + $0x50] sm:$0xff]
    %v187 = vld [vmem:[#allocation8 + $0x58] sm:$0xff]
    %v188 = vld [vmem:[#allocation8 + $0x60] sm:$0xff]
    %v189 = vld [vmem:[#allocation8 + $0x68] sm:$0xff]
    %v190 = vld [vmem:[#allocation8 + $0x70] sm:$0xff]
    %v191 = vld [vmem:[#allocation8 + $0x78] sm:$0xff]
    %192 = vmatprep.subr.mxu0 0.0
    %193 = vmatpush1.msra.mxu0 %v191
    %194 = vmatprep.subr.mxu0 0.0
    %195 = vmatpush1.msra.mxu0 %v190
    %196 = vmatprep.subr.mxu0 0.0
    %197 = vmatpush1.msra.mxu0 %v189
    %198 = vmatprep.subr.mxu0 0.0
    %199 = vmatpush1.msra.mxu0 %v188
    %200 = vmatprep.subr.mxu0 0.0
    %201 = vmatpush1.msra.mxu0 %v187
    %202 = vmatprep.subr.mxu0 0.0
    %203 = vmatpush1.msra.mxu0 %v186
    %204 = vmatprep.subr.mxu0 0.0
    %205 = vmatpush1.msra.mxu0 %v185
    %206 = vmatprep.subr.mxu0 0.0
    %207 = vmatpush1.msra.mxu0 %v184
    %208 = vmatprep.subr.mxu0 0.0
    %209 = vmatpush1.msra.mxu0 %v183
    %210 = vmatprep.subr.mxu0 0.0
    %211 = vmatpush1.msra.mxu0 %v182
    %212 = vmatprep.subr.mxu0 0.0
    %213 = vmatpush1.msra.mxu0 %v181
    %214 = vmatprep.subr.mxu0 0.0
    %215 = vmatpush1.msra.mxu0 %v180
    %216 = vmatprep.subr.mxu0 0.0
    %217 = vmatpush1.msra.mxu0 %v179
    %218 = vmatprep.subr.mxu0 0.0
    %219 = vmatpush1.msra.mxu0 %v178
    %220 = vmatprep.subr.mxu0 0.0
    %221 = vmatpush1.msra.mxu0 %v177
    %222 = vmatprep.subr.mxu0 0.0
    %223 = vmatpush1.msra.mxu0 %v176
    %224 = vmatprep.subr.mxu0 0.0
    %225 = vmatpush2.msra.mxu0 0.0
    %226 = vmatprep.subr.mxu0 0.0
    %227 = vmatpush2.msra.mxu0 0.0
    %228 = vmatprep.subr.mxu0 0.0
    %229 = vmatpush2.msra.mxu0 0.0
    %230 = vmatprep.subr.mxu0 0.0
    %231 = vmatpush2.msra.mxu0 0.0
    %232 = vmatprep.subr.mxu0 0.0
    %233 = vmatpush2.msra.mxu0 0.0
    %234 = vmatprep.subr.mxu0 0.0
    %235 = vmatpush2.msra.mxu0 0.0
    %236 = vmatprep.subr.mxu0 0.0
    %237 = vmatpush2.msra.mxu0 0.0
    %238 = vmatprep.subr.mxu0 0.0
    %239 = vmatpush2.msra.mxu0 0.0
    %240 = vmatprep.subr.mxu0 0.0
    %241 = vmatpush2.msra.mxu0 0.0
    %242 = vmatprep.subr.mxu0 0.0
    %243 = vmatpush2.msra.mxu0 0.0
    %244 = vmatprep.subr.mxu0 0.0
    %245 = vmatpush2.msra.mxu0 0.0
    %246 = vmatprep.subr.mxu0 0.0
    %247 = vmatpush2.msra.mxu0 0.0
    %248 = vmatprep.subr.mxu0 0.0
    %249 = vmatpush2.msra.mxu0 0.0
    %250 = vmatprep.subr.mxu0 0.0
    %251 = vmatpush2.msra.mxu0 0.0
    %252 = vmatprep.subr.mxu0 0.0
    %253 = vmatpush2.msra.mxu0 0.0
    %254 = vmatprep.subr.mxu0 0.0
    %255 = vmatpush2.msra.mxu0 0.0
    %256 = vmatprep.mubr.f32.mxu0 0.0
    %257 = vmatmul.mubr.f32.gmra.mxu0 %v172
    %v258 = vpop.f32.mrf.mxu0
    %v259 = vadd.f32 0.0, %v258
    %v260 = vpop.f32.mrf.mxu0
    %261 = vmatprep.mubr.f32.mxu0 0.0
    %262 = vmatmul.mubr.f32.gmra.mxu0 %v173
    %v263 = vpop.f32.mrf.mxu0
    %v264 = vadd.f32 0.0, %v263
    %v265 = vpop.f32.mrf.mxu0
    %266 = vdwg.mxu0
    %v267 = vadd.f32 %v174, %v259
    %v268 = vadd.f32 %v175, %v264
    %269 = vst [vmem:[#allocation2] sm:$0xff] %v267
    %270 = vst [vmem:[#allocation2 + $0x8] sm:$0xff] %v268
    %v271 = vld [vmem:[#allocation2] sm:$0xff]
    %v272 = vld [vmem:[#allocation2 + $0x8] sm:$0xff]
    %v273 = vld [vmem:[%s4] sm:$0x1]
    %v275 = vlaneseq
    %v276 = vshrl.u32 %v275, 7
    %v277 = vsub.s32 0, %v276
    %v278 = vrot.slane %v273, %v277
    %v280 = vadd.f32 %v271, %v278
    %v281 = vadd.f32 %v272, %v278
    %282 = vst [vmem:[#allocation9] sm:$0xff] %v280
    %283 = vst [vmem:[#allocation9 + $0x8] sm:$0xff] %v281
    // Predicated region
    $region34: #{tpu_custom_call.1} parent=1 // pred_check
      _
    $region35: #{tpu_custom_call.1} parent=1 // pred_check_branch
      %285 = sbr.rel (0) target = $region37
    $region36: #{tpu_custom_call.1} parent=1 // pred_region
      %s287 = ssub.s32 256, 256
      %288 = vsyncadd [#allocation5], %s287
      %s289 = sshll.u32 [#allocation9], 4
      %s290 = int_to_ptr.vmem [resolvable:$true] %s289
      %295 = dma.vmem_to_hbm [thread:$0]  %s290, 256, %s5, [#allocation5], 128, 128, 8
    $region37: #{tpu_custom_call.1} parent=1 // pred_fallthru
      _
    // Predicated region
    $region38: #{tpu_custom_call.1} parent=1 // pred_check
      _
    $region39: #{tpu_custom_call.1} parent=1 // pred_check_branch
      %297 = sbr.rel (0) target = $region41
    $region40: #{tpu_custom_call.1} parent=1 // pred_region
      %298 = dma.done [#allocation5], 256
    $region41: #{tpu_custom_call.1} parent=1 // pred_fallthru
      _
    %299 = vsyncpa [#allocation4], 1
    %300 = vsyncpa [#allocation7], 1
    %301 = vsyncpa [#allocation5], 1

</llo_original>
